<compile_context>
chip_gen: v7x
topology: tpu7x:2x2x1
jax: 0.10.0
libtpu: 0.0.40
codegen_flags: <defaults>
</compile_context>

<pallas_src>
import functools

import jax
import jax.numpy as jnp
import numpy as np
from jax import lax
from jax.experimental import pallas as pl
from jax.experimental.pallas import tpu as pltpu

EPS = 1e-5
LANE = 128


def _round_up(x, m):
    return (x + m - 1) // m * m


def _vmem_capacity_bytes():
    try:
        return int(pltpu.get_tpu_info().vmem_capacity_bytes)
    except Exception:
        return 64 * 1024 * 1024  # conservative: v7x has 64 MiB per TensorCore


# --------------------------------- pass 1 ------------------------------------
def _conv_stats_kernel(patches_ref, w_ref, b_ref, conv_ref, stats_ref, *,
                       tile_rows, m_total, coutp):
    """conv = patches @ w + bias, plus per-tile (row-masked) sum / sum-of-squares."""
    conv = jnp.dot(patches_ref[...], w_ref[...],
                   preferred_element_type=jnp.float32) + b_ref[...]
    conv_ref[...] = conv

    # Rows beyond the true M (padding added only to make the grid divide
    # evenly) must not contribute to the batch-norm statistics.
    row0 = pl.program_id(0) * tile_rows
    rows = row0 + lax.broadcasted_iota(jnp.int32, (tile_rows, 1), 0)
    masked = jnp.where(rows < m_total, conv, 0.0)

    s = jnp.sum(masked, axis=0, keepdims=True)             # (1, coutp)
    ss = jnp.sum(masked * masked, axis=0, keepdims=True)   # (1, coutp)
    stats_ref[0] = jnp.concatenate(
        [s, ss, jnp.zeros((6, coutp), jnp.float32)], axis=0)   # (8, coutp) block


# --------------------------------- pass 2 ------------------------------------
def _bn_act_kernel(conv_ref, mean_ref, scale_ref, act_ref, *, neg_slope, act_type):
    bn = (conv_ref[...] - mean_ref[...]) * scale_ref[...]   # bn.weight=1, bn.bias=0
    if act_type == 'ReLU':            # module maps 'ReLU' -> LeakyReLU(neg_slope)
        act = jnp.where(bn >= 0, bn, neg_slope * bn)
    elif act_type == 'Tanh':
        act = jnp.tanh(bn)
    else:                             # 'None'
        act = bn
    act_ref[...] = act


# --------------------------------- wrapper -----------------------------------
def _im2col_nhwc(x_nchw, kh, kw, stride, pad):
    """(N,Cin,H,W) -> patches (N*OH*OW, kh*kw*Cin); K ordered (kh, kw, Cin)."""
    n, c, h, w = x_nchw.shape
    x = jnp.transpose(x_nchw, (0, 2, 3, 1))                     # NHWC (small input)
    xp = jnp.pad(x, ((0, 0), (pad, pad), (pad, pad), (0, 0)))
    oh = (h + 2 * pad - kh) // stride + 1
    ow = (w + 2 * pad - kw) // stride + 1
    cols = []
    for i in range(kh):
        for j in range(kw):
            cols.append(xp[:, i:i + stride * oh:stride, j:j + stride * ow:stride, :])
    patches = jnp.concatenate(cols, axis=-1)                    # (N, OH, OW, kh*kw*Cin)
    return patches.reshape(n * oh * ow, kh * kw * c), oh, ow


def conv_bn_forward(x, weight, bias_value, relu_value, stride, pad,
                    act_type='ReLU', tile_rows=None, use_bf16_matmul=False):
    """Pallas ConvBN forward; returns (conv, activation) in NCHW (module contract)."""
    n, cin, h, w = x.shape
    cout, _, kh, kw = weight.shape

    patches, oh, ow = _im2col_nhwc(x, kh, kw, stride, pad)      # (M, K)
    m, k = patches.shape
    coutp = _round_up(cout, LANE)                               # lane-dense channel dim

    # --- generation-aware tile sizing / VMEM budget ---
    vmem_cap = _vmem_capacity_bytes()
    if tile_rows is None:
        # double-buffered f32 working set per grid step (inputs + outputs)
        bytes_per_row = 4 * (k + 2 * coutp) * 2
        tile_rows = (vmem_cap // 4) // bytes_per_row
        tile_rows = max(256, min(2048, (tile_rows // 256) * 256))
    tile_rows = _round_up(min(tile_rows, _round_up(m, 8)), 8)
    m_pad = _round_up(m, tile_rows)
    num_tiles = m_pad // tile_rows
    # half of physical VMEM at most, never above 64 MiB (plenty of headroom here)
    vmem_limit = int(min(vmem_cap // 2, 64 * 1024 * 1024))

    # zero-pad rows (even grid) and channels (lane-dense, padded cols stay 0)
    patches_p = jnp.pad(patches, ((0, m_pad - m), (0, 0)))
    w_mat = jnp.transpose(weight, (2, 3, 1, 0)).reshape(k, cout)   # K order (kh,kw,Cin)
    w_p = jnp.pad(w_mat, ((0, 0), (0, coutp - cout))).astype(jnp.float32)
    b_row = jnp.pad(jnp.full((1, cout), bias_value, jnp.float32),
                    ((0, 0), (0, coutp - cout)))

    if use_bf16_matmul:
        # optional MXU speedup on v6e/v7x; accumulation stays f32 (looser accuracy)
        patches_p = patches_p.astype(jnp.bfloat16)
        w_p = w_p.astype(jnp.bfloat16)

    cp = pltpu.CompilerParams(dimension_semantics=("parallel",),
                              vmem_limit_bytes=vmem_limit)

    # ---- pass 1: conv + per-tile stats --------------------------------------
    conv_p, stats = pl.pallas_call(
        functools.partial(_conv_stats_kernel, tile_rows=tile_rows,
                          m_total=m, coutp=coutp),
        grid=(num_tiles,),
        in_specs=[
            pl.BlockSpec((tile_rows, k), lambda i: (i, 0)),
            pl.BlockSpec((k, coutp), lambda i: (0, 0)),
            pl.BlockSpec((1, coutp), lambda i: (0, 0)),
        ],
        out_specs=(
            pl.BlockSpec((tile_rows, coutp), lambda i: (i, 0)),
            pl.BlockSpec((1, 8, coutp), lambda i: (i, 0, 0)),
        ),
        out_shape=(
            jax.ShapeDtypeStruct((m_pad, coutp), jnp.float32),
            jax.ShapeDtypeStruct((num_tiles, 8, coutp), jnp.float32),
        ),
        compiler_params=cp,
    )(patches_p, w_p, b_row)

    # ---- tiny global-stats reduction in plain jnp (a few KB) ----------------
    total = jnp.sum(stats[:, 0, :], axis=0, keepdims=True)          # (1, coutp)
    total_sq = jnp.sum(stats[:, 1, :], axis=0, keepdims=True)
    mean = total / m
    var = jnp.maximum(total_sq / m - mean * mean, 0.0)              # biased (training BN)
    scale = lax.rsqrt(var + EPS)

    # ---- pass 2: normalize + activation, tile-parallel ----------------------
    act_p = pl.pallas_call(
        functools.partial(_bn_act_kernel, neg_slope=relu_value, act_type=act_type),
        grid=(num_tiles,),
        in_specs=[
            pl.BlockSpec((tile_rows, coutp), lambda i: (i, 0)),
            pl.BlockSpec((1, coutp), lambda i: (0, 0)),
            pl.BlockSpec((1, coutp), lambda i: (0, 0)),
        ],
        out_specs=pl.BlockSpec((tile_rows, coutp), lambda i: (i, 0)),
        out_shape=jax.ShapeDtypeStruct((m_pad, coutp), jnp.float32),
        compiler_params=cp,
    )(conv_p, mean, scale)

    # Module contract returns NCHW; a fused consumer could keep the lane-dense
    # (M, Coutp) layout and skip this slice/transpose entirely.
    conv = conv_p[:m, :cout].reshape(n, oh, ow, cout).transpose(0, 3, 1, 2)
    act = act_p[:m, :cout].reshape(n, oh, ow, cout).transpose(0, 3, 1, 2)
    return conv, act


def reference_forward(x, weight, bias_value, relu_value, stride, pad, act_type='ReLU'):
    """Pure-JAX reference: Conv2d + training-mode BN(weight=1,bias=0) + activation."""
    cout = weight.shape[0]
    conv = lax.conv_general_dilated(
        x, weight, window_strides=(stride, stride),
        padding=[(pad, pad), (pad, pad)],
        dimension_numbers=("NCHW", "OIHW", "NCHW"),
    ) + jnp.full((cout,), bias_value, jnp.float32)[None, :, None, None]
    mean = conv.mean(axis=(0, 2, 3), keepdims=True)
    var = ((conv - mean) ** 2).mean(axis=(0, 2, 3), keepdims=True)
    bn = (conv - mean) * lax.rsqrt(var + EPS)
    if act_type == 'ReLU':
        act = jnp.where(bn >= 0, bn, relu_value * bn)
    elif act_type == 'Tanh':
        act = jnp.tanh(bn)
    else:
        act = bn
    return conv, act


if __name__ == "__main__":
    # ConvBN(input_channel=4, output_channel=8, kernel=3, stride=1, pad=1,
    #        bias_value=0.1, relu_value=0.2, act_type='ReLU') -> LeakyReLU(0.2)
    N, Cin, H, W = 2, 4, 16, 16
    Cout, KH, KW = 8, 3, 3
    stride, pad = 1, 1
    bias_value, relu_value = 0.1, 0.2

    key = jax.random.PRNGKey(0)
    kx, kw_ = jax.random.split(key)
    x = jax.random.normal(kx, (N, Cin, H, W), jnp.float32)
    weight = jax.random.normal(kw_, (Cout, Cin, KH, KW), jnp.float32) * 0.1

    # tile_rows=256 keeps >1 grid step at this toy size so the multi-tile
    # (partial-sums) batch-norm statistics path is actually exercised.
    conv, act = conv_bn_forward(x, weight, bias_value, relu_value, stride, pad,
                                act_type='ReLU', tile_rows=256)
    jax.block_until_ready((conv, act))

    conv_ref, act_ref = reference_forward(x, weight, bias_value, relu_value,
                                          stride, pad, act_type='ReLU')
    assert np.allclose(np.asarray(conv), np.asarray(conv_ref), rtol=1e-4, atol=1e-4)
    assert np.allclose(np.asarray(act), np.asarray(act_ref), rtol=1e-4, atol=1e-4)

    print("KERNEL_OK")
</pallas_src>

<mosaic_0001>
module attributes {stable_mosaic.version = 11 : i64} {
  func.func @_conv_stats_kernel(%arg0: i32, %arg1: memref<256x36xf32, #tpu.memory_space<vmem>>, %arg2: memref<36x128xf32, #tpu.memory_space<vmem>>, %arg3: memref<1x128xf32, #tpu.memory_space<vmem>>, %arg4: memref<256x128xf32, #tpu.memory_space<vmem>>, %arg5: memref<1x8x128xf32, #tpu.memory_space<vmem>>) attributes {dimension_semantics = [#tpu.dimension_semantics<parallel>], iteration_bounds = array<i64: 2>, scalar_prefetch = 0 : i64, scratch_operands = 0 : i64, tpu.core_type = #tpu.core_type<tc>, window_params = [{transform_indices = @transform_0, window_bounds = array<i64: 256, 36>}, {pipeline_mode = #tpu.pipeline_mode<synchronous>, transform_indices = @transform_1, window_bounds = array<i64: 36, 128>}, {pipeline_mode = #tpu.pipeline_mode<synchronous>, transform_indices = @transform_2, window_bounds = array<i64: 1, 128>}, {transform_indices = @transform_3, window_bounds = array<i64: 256, 128>}, {transform_indices = @transform_4, window_bounds = array<i64: 1, 8, 128>}]} {
    %c0 = arith.constant 0 : index
    %c0_0 = arith.constant 0 : index
    %0 = vector.load %arg1[%c0, %c0_0] : memref<256x36xf32, #tpu.memory_space<vmem>>, vector<256x36xf32>
    %c0_1 = arith.constant 0 : index
    %c0_2 = arith.constant 0 : index
    %1 = vector.load %arg2[%c0_1, %c0_2] : memref<36x128xf32, #tpu.memory_space<vmem>>, vector<36x128xf32>
    %cst = arith.constant dense<0.000000e+00> : vector<256x128xf32>
    %2 = tpu.matmul %0, %1, %cst {dimension_numbers = #tpu.dot_dimension_numbers<[1], [0], [0], [1], [0, 0, 1, 1], [], []>} : vector<256x36xf32>, vector<36x128xf32>, vector<256x128xf32> -> vector<256x128xf32>
    %c0_3 = arith.constant 0 : index
    %c0_4 = arith.constant 0 : index
    %3 = vector.load %arg3[%c0_3, %c0_4] : memref<1x128xf32, #tpu.memory_space<vmem>>, vector<1x128xf32>
    %4 = vector.broadcast %3 : vector<1x128xf32> to vector<256x128xf32>
    %5 = arith.addf %2, %4 : vector<256x128xf32>
    %c0_5 = arith.constant 0 : index
    %c0_6 = arith.constant 0 : index
    %6 = vector.load %arg4[%c0_5, %c0_6] : memref<256x128xf32, #tpu.memory_space<vmem>>, vector<256x128xf32>
    tpu.vector_store %arg4[%c0_5, %c0_6], %5 {strides = array<i32>} : memref<256x128xf32, #tpu.memory_space<vmem>>, vector<256x128xf32>,
    %c256_i32 = arith.constant 256 : i32
    %7 = arith.muli %arg0, %c256_i32 : i32
    %8 = tpu.iota {dimensions = array<i32: 0>} : vector<256x1xi32>
    %9 = vector.broadcast %7 : i32 to vector<256x1xi32>
    %10 = arith.addi %9, %8 : vector<256x1xi32>
    %c512_i32 = arith.constant 512 : i32
    %11 = vector.broadcast %c512_i32 : i32 to vector<256x1xi32>
    %12 = arith.cmpi slt, %10, %11 : vector<256x1xi32>
    %cst_7 = arith.constant 0.000000e+00 : f32
    %13 = vector.shape_cast %12 : vector<256x1xi1> to vector<256x1xi1>
    %14 = vector.broadcast %13 : vector<256x1xi1> to vector<256x128xi1>
    %15 = vector.broadcast %cst_7 : f32 to vector<256x128xf32>
    %16 = arith.select %14, %5, %15 : vector<256x128xi1>, vector<256x128xf32>
    %cst_8 = arith.constant dense<0.000000e+00> : vector<128xf32>
    %17 = vector.multi_reduction <add>, %16, %cst_8 [0] : vector<256x128xf32> to vector<128xf32>
    %18 = vector.shape_cast %17 : vector<128xf32> to vector<1x128xf32>
    %19 = arith.mulf %16, %16 : vector<256x128xf32>
    %cst_9 = arith.constant dense<0.000000e+00> : vector<128xf32>
    %20 = vector.multi_reduction <add>, %19, %cst_9 [0] : vector<256x128xf32> to vector<128xf32>
    %21 = vector.shape_cast %20 : vector<128xf32> to vector<1x128xf32>
    %cst_10 = arith.constant 0.000000e+00 : f32
    %22 = vector.broadcast %cst_10 : f32 to vector<6x128xf32>
    %23 = tpu.concatenate %18, %21, %22 in 0 : vector<1x128xf32>, vector<1x128xf32>, vector<6x128xf32> -> vector<8x128xf32>
    %c0_11 = arith.constant 0 : index
    %c0_12 = arith.constant 0 : index
    %c0_13 = arith.constant 0 : index
    %24 = vector.load %arg5[%c0_11, %c0_12, %c0_13] : memref<1x8x128xf32, #tpu.memory_space<vmem>>, vector<1x8x128xf32>
    %25 = vector.shape_cast %24 : vector<1x8x128xf32> to vector<8x128xf32>
    %26 = vector.shape_cast %23 : vector<8x128xf32> to vector<1x8x128xf32>
    tpu.vector_store %arg5[%c0_11, %c0_12, %c0_13], %26 {strides = array<i32>} : memref<1x8x128xf32, #tpu.memory_space<vmem>>, vector<1x8x128xf32>,
    return
  }
  func.func @transform_0(%arg0: i32) -> (i32, i32) {
    %c0_i32 = arith.constant 0 : i32
    %c0_i32_0 = arith.constant 0 : i32
    return %arg0, %c0_i32 : i32, i32
  }
  func.func @transform_1(%arg0: i32) -> (i32, i32) {
    %c0_i32 = arith.constant 0 : i32
    %c0_i32_0 = arith.constant 0 : i32
    %c0_i32_1 = arith.constant 0 : i32
    return %c0_i32, %c0_i32_0 : i32, i32
  }
  func.func @transform_2(%arg0: i32) -> (i32, i32) {
    %c0_i32 = arith.constant 0 : i32
    %c0_i32_0 = arith.constant 0 : i32
    %c0_i32_1 = arith.constant 0 : i32
    return %c0_i32, %c0_i32_0 : i32, i32
  }
  func.func @transform_3(%arg0: i32) -> (i32, i32) {
    %c0_i32 = arith.constant 0 : i32
    %c0_i32_0 = arith.constant 0 : i32
    return %arg0, %c0_i32 : i32, i32
  }
  func.func @transform_4(%arg0: i32) -> (i32, i32, i32) {
    %c0_i32 = arith.constant 0 : i32
    %c0_i32_0 = arith.constant 0 : i32
    %c0_i32_1 = arith.constant 0 : i32
    return %arg0, %c0_i32, %c0_i32_0 : i32, i32, i32
  }
}

</mosaic_0001>

<llo_original>
// kernel: tpu_custom_call.1
$region0: #{tpu_custom_call.1}
  #allocation0 [shape = 'u32[]', space=smem, size = 0x4, offset = 0x4, fixed_abs, tag = 'smem constant byte address 0x4 - core index']
  #allocation1 [shape = 'u32[144,128]{1,0:T(1,128)}', space=vmem, size = 0x12000, scoped, tag = 'internal scratch']
  %s0 = inlined_call_operand.vmem [shape: f32[512,36], index: 0, kind: input, shape index: {}]
  %s1 = inlined_call_operand.vmem [shape: f32[36,128], index: 1, kind: input, shape index: {}]
  %s2 = inlined_call_operand.vmem [shape: f32[1,128], index: 2, kind: input, shape index: {}]
  %s3 = inlined_call_operand.hbm [shape: f32[512,128], index: 3, kind: output, shape index: {0}]
  %s4 = inlined_call_operand.hbm [shape: f32[2,8,128], index: 4, kind: output, shape index: {1}]
  %5 = xla_tuple %s3, %s4
  %s6 = sld [smem:[#allocation0]]
  $region53: #{tpu_custom_call.1} parent=0
    _
  %s8 = ssub.s32 1, %s6
  %s9 = scalar_select 0, %s8, %s6
  $region1: #{tpu_custom_call.1} parent=0
    #allocation2 [shape = 'u8[262144]{0}', space=vmem, size = 0x40000, scoped, tag = 'output window, operand 0']
    #allocation3 [shape = 's32[2]{0}', space=sflag, size = 0x8, scoped, tag = 'scoped memory for tpu_custom_call.1']
    #allocation4 [shape = 'u8[8192]{0}', space=vmem, size = 0x2000, scoped, tag = 'output window, operand 1']
    #allocation5 [shape = 's32[2]{0}', space=sflag, size = 0x8, scoped, tag = 'scoped memory for tpu_custom_call.1']
    %10 = vsyncpa [#allocation3], 0
    %s11 = scalar_lea.sflag [#allocation3], 1
    %12 = vsyncpa %s11, 0
    %13 = vsyncpa [#allocation5], 0
    %s14 = scalar_lea.sflag [#allocation5], 1
    %15 = vsyncpa %s14, 0
    loop: start=0, step=1, limit=4
    $region2: #{tpu_custom_call.1} parent=1 // loop_pre_header
      _
    $region3: #{tpu_custom_call.1} parent=1 // loop_header
      %s17 = sphi 0, %s21
      %p18 = scmp.ge.s32.totalorder %s17, 4
      %s27 = sphi 0, %s29
      %s30 = sphi 0, %s27
      %s31 = sphi 0, %s30
      %s47 = sphi 0, %s31
      %s51 = sphi 0, %s51
      %s53 = sphi 0, %s51
      %s54 = sphi 0, %s53
      %s68 = sphi 0, %s54
      %s72 = sphi 0, %s72
      %s74 = sphi 0, %s72
      %s75 = sphi 0, %s74
      %s89 = sphi 0, %s75
      %s95 = sphi 0, %s97
      %s98 = sphi 0, %s95
      %s99 = sphi 0, %s98
      %s115 = sphi 0, %s99
      %s121 = sphi 0, %s123
      %s124 = sphi 0, %s121
      %s125 = sphi 0, %s124
      %s141 = sphi 0, %s125
    $region4: #{tpu_custom_call.1} parent=1 // loop_header_branch
      %20 = sbr.rel (%p18) target = $region8
    $region5: #{tpu_custom_call.1} parent=1 // loop_body
      %s22 = ssub.s32 %s17, 1
      %s23 = ssub.s32 %s17, 2
      %s24 = sadd.s32 %s17, 1
      %s25 = ssub.s32 %s17, %s24
      %p26 = scmp.eq.s32.totalorder %s25, 0
      %s28 = sadd.s32 %s27, 1
      %s29 = scalar_select %p26, %s27, %s28
      %p32 = pneg %p26
      %p33 = scmp.eq.s32.totalorder %s17, 1
      %p34 = por %p32, %p33
      %p35 = scmp.ne.s32.totalorder %s27, %s30
      %p36 = scmp.eq.s32.totalorder %s17, 0
      %p37 = por %p35, %p36
      %p38 = scmp.ne.s32.totalorder %s27, %s30
      %p39 = scmp.eq.s32.totalorder %s22, 1
      %p40 = por %p38, %p39
      %p41 = scmp.ne.s32.totalorder %s30, %s31
      %p42 = scmp.eq.s32.totalorder %s22, 0
      %p43 = por %p41, %p42
      %p44 = scmp.ne.s32.totalorder %s30, %s31
      %p45 = scmp.eq.s32.totalorder %s23, 1
      %p46 = por %p44, %p45
      %p48 = scmp.ne.s32.totalorder %s31, %s47
      %p49 = scmp.eq.s32.totalorder %s23, 0
      %p50 = por %p48, %p49
      %s52 = sadd.s32 %s51, 1
      %p55 = scmp.eq.s32.totalorder %s17, 1
      %p56 = scmp.ne.s32.totalorder %s51, %s53
      %p57 = scmp.eq.s32.totalorder %s17, 0
      %p58 = por %p56, %p57
      %p59 = scmp.ne.s32.totalorder %s51, %s53
      %p60 = scmp.eq.s32.totalorder %s22, 1
      %p61 = por %p59, %p60
      %p62 = scmp.ne.s32.totalorder %s53, %s54
      %p63 = scmp.eq.s32.totalorder %s22, 0
      %p64 = por %p62, %p63
      %p65 = scmp.ne.s32.totalorder %s53, %s54
      %p66 = scmp.eq.s32.totalorder %s23, 1
      %p67 = por %p65, %p66
      %p69 = scmp.ne.s32.totalorder %s54, %s68
      %p70 = scmp.eq.s32.totalorder %s23, 0
      %p71 = por %p69, %p70
      %s73 = sadd.s32 %s72, 1
      %p76 = scmp.eq.s32.totalorder %s17, 1
      %p77 = scmp.ne.s32.totalorder %s72, %s74
      %p78 = scmp.eq.s32.totalorder %s17, 0
      %p79 = por %p77, %p78
      %p80 = scmp.ne.s32.totalorder %s72, %s74
      %p81 = scmp.eq.s32.totalorder %s22, 1
      %p82 = por %p80, %p81
      %p83 = scmp.ne.s32.totalorder %s74, %s75
      %p84 = scmp.eq.s32.totalorder %s22, 0
      %p85 = por %p83, %p84
      %p86 = scmp.ne.s32.totalorder %s74, %s75
      %p87 = scmp.eq.s32.totalorder %s23, 1
      %p88 = por %p86, %p87
      %p90 = scmp.ne.s32.totalorder %s75, %s89
      %p91 = scmp.eq.s32.totalorder %s23, 0
      %p92 = por %p90, %p91
      %s93 = ssub.s32 %s17, %s24
      %p94 = scmp.eq.s32.totalorder %s93, 0
      %s96 = sadd.s32 %s95, 1
      %s97 = scalar_select %p94, %s95, %s96
      %p100 = pneg %p94
      %p101 = scmp.eq.s32.totalorder %s17, 1
      %p102 = por %p100, %p101
      %p103 = scmp.ne.s32.totalorder %s95, %s98
      %p104 = scmp.eq.s32.totalorder %s17, 0
      %p105 = por %p103, %p104
      %p106 = scmp.ne.s32.totalorder %s95, %s98
      %p107 = scmp.eq.s32.totalorder %s22, 1
      %p108 = por %p106, %p107
      %p109 = scmp.ne.s32.totalorder %s98, %s99
      %p110 = scmp.eq.s32.totalorder %s22, 0
      %p111 = por %p109, %p110
      %p112 = scmp.ne.s32.totalorder %s98, %s99
      %p113 = scmp.eq.s32.totalorder %s23, 1
      %p114 = por %p112, %p113
      %p116 = scmp.ne.s32.totalorder %s99, %s115
      %p117 = scmp.eq.s32.totalorder %s23, 0
      %p118 = por %p116, %p117
      %s119 = ssub.s32 %s17, %s24
      %p120 = scmp.eq.s32.totalorder %s119, 0
      %s122 = sadd.s32 %s121, 1
      %s123 = scalar_select %p120, %s121, %s122
      %p126 = pneg %p120
      %p127 = scmp.eq.s32.totalorder %s17, 1
      %p128 = por %p126, %p127
      %p129 = scmp.ne.s32.totalorder %s121, %s124
      %p130 = scmp.eq.s32.totalorder %s17, 0
      %p131 = por %p129, %p130
      %p132 = scmp.ne.s32.totalorder %s121, %s124
      %p133 = scmp.eq.s32.totalorder %s22, 1
      %p134 = por %p132, %p133
      %p135 = scmp.ne.s32.totalorder %s124, %s125
      %p136 = scmp.eq.s32.totalorder %s22, 0
      %p137 = por %p135, %p136
      %p138 = scmp.ne.s32.totalorder %s124, %s125
      %p139 = scmp.eq.s32.totalorder %s23, 1
      %p140 = por %p138, %p139
      %p142 = scmp.ne.s32.totalorder %s125, %s141
      %p143 = scmp.eq.s32.totalorder %s23, 0
      %p144 = por %p142, %p143
      %p145 = scmp.le.s32.totalorder 1, %s17
      %p146 = scmp.lt.s32.totalorder %s17, 3
      %p147 = pnand %p145, %p146
      %p148 = pneg %p147
      // Predicated region
      $region9: #{tpu_custom_call.1} parent=5 // pred_check
        _
      $region10: #{tpu_custom_call.1} parent=5 // pred_check_branch
        %150 = sbr.rel (%p147) target = $region12
      $region11: #{tpu_custom_call.1} parent=5 // pred_region
        %s151 = ssub.s32 %s17, 1
        // Predicated region
        $region13: #{tpu_custom_call.1} parent=11 // pred_check
          %p152 = pneg %p64
        $region14: #{tpu_custom_call.1} parent=11 // pred_check_branch
          %154 = sbr.rel (%p152) target = $region16
        $region15: #{tpu_custom_call.1} parent=11 // pred_region
          _
        $region16: #{tpu_custom_call.1} parent=11 // pred_fallthru
          _
        // Predicated region
        $region17: #{tpu_custom_call.1} parent=11 // pred_check
          %p155 = pneg %p85
        $region18: #{tpu_custom_call.1} parent=11 // pred_check_branch
          %157 = sbr.rel (%p155) target = $region20
        $region19: #{tpu_custom_call.1} parent=11 // pred_region
          _
        $region20: #{tpu_custom_call.1} parent=11 // pred_fallthru
          _
      $region12: #{tpu_custom_call.1} parent=5 // pred_fallthru
        _
      %p158 = scmp.lt.s32.totalorder %s17, 2
      // Predicated region
      $region21: #{tpu_custom_call.1} parent=5 // pred_check
        %p159 = pneg %p158
      $region22: #{tpu_custom_call.1} parent=5 // pred_check_branch
        %161 = sbr.rel (%p159) target = $region24
      $region23: #{tpu_custom_call.1} parent=5 // pred_region
        // Predicated region
        $region25: #{tpu_custom_call.1} parent=23 // pred_check
          %p162 = pneg %p37
        $region26: #{tpu_custom_call.1} parent=23 // pred_check_branch
          %164 = sbr.rel (%p162) target = $region28
        $region27: #{tpu_custom_call.1} parent=23 // pred_region
          %s165 = smul.u32 32, %s17
          %p166 = scmp.lt.s32.totalorder %s165, 63
          %s167 = scalar_select %p166, %s165, 63
          %s168 = smul.addr %s167, 8
          %s169 = scalar_lea.vmem %s0, %s168
          %s170 = smul.u32 32, %s17
        $region28: #{tpu_custom_call.1} parent=23 // pred_fallthru
          _
      $region24: #{tpu_custom_call.1} parent=5 // pred_fallthru
        _
      %p171 = scmp.le.s32.totalorder 1, %s17
      %p172 = scmp.lt.s32.totalorder %s17, 3
      %p173 = pnand %p171, %p172
      %p174 = pneg %p173
      // Predicated region
      $region29: #{tpu_custom_call.1} parent=5 // pred_check
        _
      $region30: #{tpu_custom_call.1} parent=5 // pred_check_branch
        %176 = sbr.rel (%p173) target = $region32
      $region31: #{tpu_custom_call.1} parent=5 // pred_region
        %s177 = ssub.s32 %s17, 1
        %s178 = smul.u32 32, %s22
        %p179 = scmp.lt.s32.totalorder %s178, 63
        %s180 = scalar_select %p179, %s178, 63
        %s181 = smul.addr %s180, 8
        %s182 = scalar_lea.vmem %s0, %s181
        %p183 = pneg %p43
        %p184 = pneg %p40
        %p185 = pneg %p64
        %p186 = pneg %p61
        %p187 = pneg %p85
        %p188 = pneg %p82
        %p189 = pneg %p111
        %p190 = pneg %p108
        %s191 = sand.u32 %s98, 1
        %s192 = scalar_lea.sflag [#allocation3], %s191
        %s193 = sand.u32 %s98, 1
        %s194 = smul.addr %s193, 256
        %s195 = scalar_lea.vmem [#allocation2], %s194
        %p196 = pneg %p137
        %p197 = pneg %p134
        %s198 = sand.u32 %s124, 1
        %s199 = scalar_lea.sflag [#allocation5], %s198
        %s200 = sand.u32 %s124, 1
        %s201 = smul.addr %s200, 8
        %s202 = scalar_lea.vmem [#allocation4], %s201
        %s203 = smul.u32 32, %s22
        %p204 = scmp.lt.s32.totalorder %s203, 63
        %s205 = scalar_select %p204, %s203, 63
        %s206 = smul.addr %s205, 8
        %s207 = scalar_lea.vmem %s0, %s206
        %s208 = smul.u32 32, %s22
        %s209 = smul.u32 32, %s22
        %v210 = vld [vmem:[%s207] sm:$0xff]
        %v211 = vld [vmem:[%s207 + $0x8] sm:$0xff]
        %v212 = vld [vmem:[%s207 + $0x10] sm:$0xff]
        %v213 = vld [vmem:[%s207 + $0x18] sm:$0xff]
        %v214 = vld [vmem:[%s207 + $0x20] sm:$0xff]
        %v215 = vld [vmem:[%s207 + $0x28] sm:$0xff]
        %v216 = vld [vmem:[%s207 + $0x30] sm:$0xff]
        %v217 = vld [vmem:[%s207 + $0x38] sm:$0xff]
        %v218 = vld [vmem:[%s207 + $0x40] sm:$0xff]
        %v219 = vld [vmem:[%s207 + $0x48] sm:$0xff]
        %v220 = vld [vmem:[%s207 + $0x50] sm:$0xff]
        %v221 = vld [vmem:[%s207 + $0x58] sm:$0xff]
        %v222 = vld [vmem:[%s207 + $0x60] sm:$0xff]
        %v223 = vld [vmem:[%s207 + $0x68] sm:$0xff]
        %v224 = vld [vmem:[%s207 + $0x70] sm:$0xff]
        %v225 = vld [vmem:[%s207 + $0x78] sm:$0xff]
        %v226 = vld [vmem:[%s207 + $0x80] sm:$0xff]
        %v227 = vld [vmem:[%s207 + $0x88] sm:$0xff]
        %v228 = vld [vmem:[%s207 + $0x90] sm:$0xff]
        %v229 = vld [vmem:[%s207 + $0x98] sm:$0xff]
        %v230 = vld [vmem:[%s207 + $0xa0] sm:$0xff]
        %v231 = vld [vmem:[%s207 + $0xa8] sm:$0xff]
        %v232 = vld [vmem:[%s207 + $0xb0] sm:$0xff]
        %v233 = vld [vmem:[%s207 + $0xb8] sm:$0xff]
        %v234 = vld [vmem:[%s207 + $0xc0] sm:$0xff]
        %v235 = vld [vmem:[%s207 + $0xc8] sm:$0xff]
        %v236 = vld [vmem:[%s207 + $0xd0] sm:$0xff]
        %v237 = vld [vmem:[%s207 + $0xd8] sm:$0xff]
        %v238 = vld [vmem:[%s207 + $0xe0] sm:$0xff]
        %v239 = vld [vmem:[%s207 + $0xe8] sm:$0xff]
        %v240 = vld [vmem:[%s207 + $0xf0] sm:$0xff]
        %v241 = vld [vmem:[%s207 + $0xf8] sm:$0xff]
        %v242 = vld [vmem:[%s1] sm:$0xff]
        %v243 = vld [vmem:[%s1 + $0x8] sm:$0xff]
        %v244 = vld [vmem:[%s1 + $0x10] sm:$0xff]
        %v245 = vld [vmem:[%s1 + $0x18] sm:$0xff]
        %v246 = vld [vmem:[%s1 + $0x20] sm:$0xf]
        %v247 = vld [vmem:[%s2] sm:$0x1]
        %v249 = vlaneseq
        %v250 = vshrl.u32 %v249, 7
        %v251 = vsub.s32 0, %v250
        %v252 = vrot.slane %v247, %v251
        %vm254 = vcmask 293888
        %v256 = vsel %vm254, %v210, 0
        %v259 = vsel %vm254, %v211, 0
        %v262 = vsel %vm254, %v212, 0
        %v265 = vsel %vm254, %v213, 0
        %v268 = vsel %vm254, %v214, 0
        %v271 = vsel %vm254, %v215, 0
        %v274 = vsel %vm254, %v216, 0
        %v277 = vsel %vm254, %v217, 0
        %v280 = vsel %vm254, %v218, 0
        %v283 = vsel %vm254, %v219, 0
        %v286 = vsel %vm254, %v220, 0
        %v289 = vsel %vm254, %v221, 0
        %v292 = vsel %vm254, %v222, 0
        %v295 = vsel %vm254, %v223, 0
        %v298 = vsel %vm254, %v224, 0
        %v301 = vsel %vm254, %v225, 0
        %v304 = vsel %vm254, %v226, 0
        %v307 = vsel %vm254, %v227, 0
        %v310 = vsel %vm254, %v228, 0
        %v313 = vsel %vm254, %v229, 0
        %v316 = vsel %vm254, %v230, 0
        %v319 = vsel %vm254, %v231, 0
        %v322 = vsel %vm254, %v232, 0
        %v325 = vsel %vm254, %v233, 0
        %v328 = vsel %vm254, %v234, 0
        %v331 = vsel %vm254, %v235, 0
        %v334 = vsel %vm254, %v236, 0
        %v337 = vsel %vm254, %v237, 0
        %v340 = vsel %vm254, %v238, 0
        %v343 = vsel %vm254, %v239, 0
        %v346 = vsel %vm254, %v240, 0
        %v349 = vsel %vm254, %v241, 0
        %vm351 = vcmask 1043456
        %v353 = vsel %vm351, %v246, 0
        %355 = vmatprep.subr.mxu0 0.0
        %356 = vmatpush1.msra.mxu0 %v242
        %357 = vmatprep.subr.mxu0 0.0
        %358 = vmatpush1.msra.mxu0 %v243
        %359 = vmatprep.subr.mxu0 0.0
        %360 = vmatpush1.msra.mxu0 %v244
        %361 = vmatprep.subr.mxu0 0.0
        %362 = vmatpush1.msra.mxu0 %v245
        %363 = vmatprep.subr.mxu0 0.0
        %364 = vmatpush1.msra.mxu0 %v353
        %365 = vmatprep.subr.mxu0 0.0
        %366 = vmatpush1.msra.mxu0 0.0
        %367 = vmatprep.subr.mxu0 0.0
        %368 = vmatpush1.msra.mxu0 0.0
        %369 = vmatprep.subr.mxu0 0.0
        %370 = vmatpush1.msra.mxu0 0.0
        %371 = vmatprep.subr.mxu0 0.0
        %372 = vmatpush1.msra.mxu0 0.0
        %373 = vmatprep.subr.mxu0 0.0
        %374 = vmatpush1.msra.mxu0 0.0
        %375 = vmatprep.subr.mxu0 0.0
        %376 = vmatpush1.msra.mxu0 0.0
        %377 = vmatprep.subr.mxu0 0.0
        %378 = vmatpush1.msra.mxu0 0.0
        %379 = vmatprep.subr.mxu0 0.0
        %380 = vmatpush1.msra.mxu0 0.0
        %381 = vmatprep.subr.mxu0 0.0
        %382 = vmatpush1.msra.mxu0 0.0
        %383 = vmatprep.subr.mxu0 0.0
        %384 = vmatpush1.msra.mxu0 0.0
        %385 = vmatprep.subr.mxu0 0.0
        %386 = vmatpush1.msra.mxu0 0.0
        %387 = vmatprep.subr.mxu0 0.0
        %388 = vmatpush1.msra.mxu0 0.0
        %389 = vmatprep.subr.mxu0 0.0
        %390 = vmatpush1.msra.mxu0 0.0
        %391 = vmatprep.subr.mxu0 0.0
        %392 = vmatpush1.msra.mxu0 0.0
        %393 = vmatprep.subr.mxu0 0.0
        %394 = vmatpush1.msra.mxu0 0.0
        %395 = vmatprep.subr.mxu0 0.0
        %396 = vmatpush1.msra.mxu0 0.0
        %397 = vmatprep.subr.mxu0 0.0
        %398 = vmatpush1.msra.mxu0 0.0
        %399 = vmatprep.subr.mxu0 0.0
        %400 = vmatpush1.msra.mxu0 0.0
        %401 = vmatprep.subr.mxu0 0.0
        %402 = vmatpush1.msra.mxu0 0.0
        %403 = vmatprep.subr.mxu0 0.0
        %404 = vmatpush1.msra.mxu0 0.0
        %405 = vmatprep.subr.mxu0 0.0
        %406 = vmatpush1.msra.mxu0 0.0
        %407 = vmatprep.subr.mxu0 0.0
        %408 = vmatpush1.msra.mxu0 0.0
        %409 = vmatprep.subr.mxu0 0.0
        %410 = vmatpush1.msra.mxu0 0.0
        %411 = vmatprep.subr.mxu0 0.0
        %412 = vmatpush1.msra.mxu0 0.0
        %413 = vmatprep.subr.mxu0 0.0
        %414 = vmatpush1.msra.mxu0 0.0
        %415 = vmatprep.subr.mxu0 0.0
        %416 = vmatpush1.msra.mxu0 0.0
        %417 = vmatprep.subr.mxu0 0.0
        %418 = vmatpush1.msra.mxu0 0.0
        %419 = vmatprep.mubr.f32.mxu0 0.0
        %420 = vmatmul.mubr.f32.gmra.mrb[0].mxu0 %v256
        %v421 = vpop.f32.mrb[0].mxu0
        %v422 = vadd.f32 %v252, %v421
        %v423 = vpop.f32.mrb[0].mxu0
        %424 = vmatprep.mubr.f32.mxu0 0.0
        %425 = vmatmul.mubr.f32.gmra.mrb[0].mxu0 %v259
        %v426 = vpop.f32.mrb[0].mxu0
        %v427 = vadd.f32 %v252, %v426
        %v428 = vpop.f32.mrb[0].mxu0
        %429 = vmatprep.mubr.f32.mxu0 0.0
        %430 = vmatmul.mubr.f32.gmra.mrb[0].mxu0 %v262
        %v431 = vpop.f32.mrb[0].mxu0
        %v432 = vadd.f32 %v252, %v431
        %v433 = vpop.f32.mrb[0].mxu0
        %434 = vmatprep.mubr.f32.mxu0 0.0
        %435 = vmatmul.mubr.f32.gmra.mrb[0].mxu0 %v265
        %v436 = vpop.f32.mrb[0].mxu0
        %v437 = vadd.f32 %v252, %v436
        %v438 = vpop.f32.mrb[0].mxu0
        %439 = vmatprep.mubr.f32.mxu0 0.0
        %440 = vmatmul.mubr.f32.gmra.mrb[0].mxu0 %v268
        %v441 = vpop.f32.mrb[0].mxu0
        %v442 = vadd.f32 %v252, %v441
        %v443 = vpop.f32.mrb[0].mxu0
        %444 = vmatprep.mubr.f32.mxu0 0.0
        %445 = vmatmul.mubr.f32.gmra.mrb[0].mxu0 %v271
        %v446 = vpop.f32.mrb[0].mxu0
        %v447 = vadd.f32 %v252, %v446
        %v448 = vpop.f32.mrb[0].mxu0
        %449 = vmatprep.mubr.f32.mxu0 0.0
        %450 = vmatmul.mubr.f32.gmra.mrb[0].mxu0 %v274
        %v451 = vpop.f32.mrb[0].mxu0
        %v452 = vadd.f32 %v252, %v451
        %v453 = vpop.f32.mrb[0].mxu0
        %454 = vmatprep.mubr.f32.mxu0 0.0
        %455 = vmatmul.mubr.f32.gmra.mrb[0].mxu0 %v277
        %v456 = vpop.f32.mrb[0].mxu0
        %v457 = vadd.f32 %v252, %v456
        %v458 = vpop.f32.mrb[0].mxu0
        %459 = vmatprep.mubr.f32.mxu0 0.0
        %460 = vmatmul.mubr.f32.gmra.mrb[0].mxu0 %v280
        %v461 = vpop.f32.mrb[0].mxu0
        %v462 = vadd.f32 %v252, %v461
        %v463 = vpop.f32.mrb[0].mxu0
        %464 = vmatprep.mubr.f32.mxu0 0.0
        %465 = vmatmul.mubr.f32.gmra.mrb[0].mxu0 %v283
        %v466 = vpop.f32.mrb[0].mxu0
        %v467 = vadd.f32 %v252, %v466
        %v468 = vpop.f32.mrb[0].mxu0
        %469 = vmatprep.mubr.f32.mxu0 0.0
        %470 = vmatmul.mubr.f32.gmra.mrb[0].mxu0 %v286
        %v471 = vpop.f32.mrb[0].mxu0
        %v472 = vadd.f32 %v252, %v471
        %v473 = vpop.f32.mrb[0].mxu0
        %474 = vmatprep.mubr.f32.mxu0 0.0
        %475 = vmatmul.mubr.f32.gmra.mrb[0].mxu0 %v289
        %v476 = vpop.f32.mrb[0].mxu0
        %v477 = vadd.f32 %v252, %v476
        %v478 = vpop.f32.mrb[0].mxu0
        %479 = vmatprep.mubr.f32.mxu0 0.0
        %480 = vmatmul.mubr.f32.gmra.mrb[0].mxu0 %v292
        %v481 = vpop.f32.mrb[0].mxu0
        %v482 = vadd.f32 %v252, %v481
        %v483 = vpop.f32.mrb[0].mxu0
        %484 = vmatprep.mubr.f32.mxu0 0.0
        %485 = vmatmul.mubr.f32.gmra.mrb[0].mxu0 %v295
        %v486 = vpop.f32.mrb[0].mxu0
        %v487 = vadd.f32 %v252, %v486
        %v488 = vpop.f32.mrb[0].mxu0
        %489 = vmatprep.mubr.f32.mxu0 0.0
        %490 = vmatmul.mubr.f32.gmra.mrb[0].mxu0 %v298
        %v491 = vpop.f32.mrb[0].mxu0
        %v492 = vadd.f32 %v252, %v491
        %v493 = vpop.f32.mrb[0].mxu0
        %494 = vmatprep.mubr.f32.mxu0 0.0
        %495 = vmatmul.mubr.f32.gmra.mrb[0].mxu0 %v301
        %v496 = vpop.f32.mrb[0].mxu0
        %v497 = vadd.f32 %v252, %v496
        %v498 = vpop.f32.mrb[0].mxu0
        %499 = vmatprep.mubr.f32.mxu0 0.0
        %500 = vmatmul.mubr.f32.gmra.mrb[0].mxu0 %v304
        %v501 = vpop.f32.mrb[0].mxu0
        %v502 = vadd.f32 %v252, %v501
        %v503 = vpop.f32.mrb[0].mxu0
        %504 = vmatprep.mubr.f32.mxu0 0.0
        %505 = vmatmul.mubr.f32.gmra.mrb[0].mxu0 %v307
        %v506 = vpop.f32.mrb[0].mxu0
        %v507 = vadd.f32 %v252, %v506
        %v508 = vpop.f32.mrb[0].mxu0
        %509 = vmatprep.mubr.f32.mxu0 0.0
        %510 = vmatmul.mubr.f32.gmra.mrb[0].mxu0 %v310
        %v511 = vpop.f32.mrb[0].mxu0
        %v512 = vadd.f32 %v252, %v511
        %v513 = vpop.f32.mrb[0].mxu0
        %514 = vmatprep.mubr.f32.mxu0 0.0
        %515 = vmatmul.mubr.f32.gmra.mrb[0].mxu0 %v313
        %v516 = vpop.f32.mrb[0].mxu0
        %v517 = vadd.f32 %v252, %v516
        %v518 = vpop.f32.mrb[0].mxu0
        %519 = vmatprep.mubr.f32.mxu0 0.0
        %520 = vmatmul.mubr.f32.gmra.mrb[0].mxu0 %v316
        %v521 = vpop.f32.mrb[0].mxu0
        %v522 = vadd.f32 %v252, %v521
        %v523 = vpop.f32.mrb[0].mxu0
        %524 = vmatprep.mubr.f32.mxu0 0.0
        %525 = vmatmul.mubr.f32.gmra.mrb[0].mxu0 %v319
        %v526 = vpop.f32.mrb[0].mxu0
        %v527 = vadd.f32 %v252, %v526
        %v528 = vpop.f32.mrb[0].mxu0
        %529 = vmatprep.mubr.f32.mxu0 0.0
        %530 = vmatmul.mubr.f32.gmra.mrb[0].mxu0 %v322
        %v531 = vpop.f32.mrb[0].mxu0
        %v532 = vadd.f32 %v252, %v531
        %v533 = vpop.f32.mrb[0].mxu0
        %534 = vmatprep.mubr.f32.mxu0 0.0
        %535 = vmatmul.mubr.f32.gmra.mrb[0].mxu0 %v325
        %v536 = vpop.f32.mrb[0].mxu0
        %v537 = vadd.f32 %v252, %v536
        %v538 = vpop.f32.mrb[0].mxu0
        %539 = vmatprep.mubr.f32.mxu0 0.0
        %540 = vmatmul.mubr.f32.gmra.mrb[0].mxu0 %v328
        %v541 = vpop.f32.mrb[0].mxu0
        %v542 = vadd.f32 %v252, %v541
        %v543 = vpop.f32.mrb[0].mxu0
        %544 = vmatprep.mubr.f32.mxu0 0.0
        %545 = vmatmul.mubr.f32.gmra.mrb[0].mxu0 %v331
        %v546 = vpop.f32.mrb[0].mxu0
        %v547 = vadd.f32 %v252, %v546
        %v548 = vpop.f32.mrb[0].mxu0
        %549 = vmatprep.mubr.f32.mxu0 0.0
        %550 = vmatmul.mubr.f32.gmra.mrb[0].mxu0 %v334
        %v551 = vpop.f32.mrb[0].mxu0
        %v552 = vadd.f32 %v252, %v551
        %v553 = vpop.f32.mrb[0].mxu0
        %554 = vmatprep.mubr.f32.mxu0 0.0
        %555 = vmatmul.mubr.f32.gmra.mrb[0].mxu0 %v337
        %v556 = vpop.f32.mrb[0].mxu0
        %v557 = vadd.f32 %v252, %v556
        %v558 = vpop.f32.mrb[0].mxu0
        %559 = vmatprep.mubr.f32.mxu0 0.0
        %560 = vmatmul.mubr.f32.gmra.mrb[0].mxu0 %v340
        %v561 = vpop.f32.mrb[0].mxu0
        %v562 = vadd.f32 %v252, %v561
        %v563 = vpop.f32.mrb[0].mxu0
        %564 = vmatprep.mubr.f32.mxu0 0.0
        %565 = vmatmul.mubr.f32.gmra.mrb[0].mxu0 %v343
        %v566 = vpop.f32.mrb[0].mxu0
        %v567 = vadd.f32 %v252, %v566
        %v568 = vpop.f32.mrb[0].mxu0
        %569 = vmatprep.mubr.f32.mxu0 0.0
        %570 = vmatmul.mubr.f32.gmra.mrb[0].mxu0 %v346
        %v571 = vpop.f32.mrb[0].mxu0
        %v572 = vadd.f32 %v252, %v571
        %v573 = vpop.f32.mrb[0].mxu0
        %574 = vmatprep.mubr.f32.mxu0 0.0
        %575 = vmatmul.mubr.f32.gmra.mrb[0].mxu0 %v349
        %v576 = vpop.f32.mrb[0].mxu0
        %v577 = vadd.f32 %v252, %v576
        %v578 = vpop.f32.mrb[0].mxu0
        %579 = vdwg.mxu0
        %580 = vst [vmem:[%s195] sm:$0xff] %v422
        %581 = vst [vmem:[%s195 + $0x8] sm:$0xff] %v427
        %582 = vst [vmem:[%s195 + $0x10] sm:$0xff] %v432
        %583 = vst [vmem:[%s195 + $0x18] sm:$0xff] %v437
        %584 = vst [vmem:[%s195 + $0x20] sm:$0xff] %v442
        %585 = vst [vmem:[%s195 + $0x28] sm:$0xff] %v447
        %586 = vst [vmem:[%s195 + $0x30] sm:$0xff] %v452
        %587 = vst [vmem:[%s195 + $0x38] sm:$0xff] %v457
        %588 = vst [vmem:[%s195 + $0x40] sm:$0xff] %v462
        %589 = vst [vmem:[%s195 + $0x48] sm:$0xff] %v467
        %590 = vst [vmem:[%s195 + $0x50] sm:$0xff] %v472
        %591 = vst [vmem:[%s195 + $0x58] sm:$0xff] %v477
        %592 = vst [vmem:[%s195 + $0x60] sm:$0xff] %v482
        %593 = vst [vmem:[%s195 + $0x68] sm:$0xff] %v487
        %594 = vst [vmem:[%s195 + $0x70] sm:$0xff] %v492
        %595 = vst [vmem:[%s195 + $0x78] sm:$0xff] %v497
        %596 = vst [vmem:[%s195 + $0x80] sm:$0xff] %v502
        %597 = vst [vmem:[%s195 + $0x88] sm:$0xff] %v507
        %598 = vst [vmem:[%s195 + $0x90] sm:$0xff] %v512
        %599 = vst [vmem:[%s195 + $0x98] sm:$0xff] %v517
        %600 = vst [vmem:[%s195 + $0xa0] sm:$0xff] %v522
        %601 = vst [vmem:[%s195 + $0xa8] sm:$0xff] %v527
        %602 = vst [vmem:[%s195 + $0xb0] sm:$0xff] %v532
        %603 = vst [vmem:[%s195 + $0xb8] sm:$0xff] %v537
        %604 = vst [vmem:[%s195 + $0xc0] sm:$0xff] %v542
        %605 = vst [vmem:[%s195 + $0xc8] sm:$0xff] %v547
        %606 = vst [vmem:[%s195 + $0xd0] sm:$0xff] %v552
        %607 = vst [vmem:[%s195 + $0xd8] sm:$0xff] %v557
        %608 = vst [vmem:[%s195 + $0xe0] sm:$0xff] %v562
        %609 = vst [vmem:[%s195 + $0xe8] sm:$0xff] %v567
        %610 = vst [vmem:[%s195 + $0xf0] sm:$0xff] %v572
        %611 = vst [vmem:[%s195 + $0xf8] sm:$0xff] %v577
        %s612 = smul.u32 %s22, 256
        %v613 = vlaneseq
        %v614 = vshrl.u32 %v613, 7
        %v615 = vadd.s32 %v614, 8
        %v616 = vadd.s32 %v614, 16
        %v617 = vadd.s32 %v614, 24
        %v618 = vadd.s32 %v614, 32
        %v619 = vadd.s32 %v614, 40
        %v620 = vadd.s32 %v614, 48
        %v621 = vadd.s32 %v614, 56
        %v622 = vadd.s32 %v614, 64
        %v623 = vadd.s32 %v614, 72
        %v624 = vadd.s32 %v614, 80
        %v625 = vadd.s32 %v614, 88
        %v626 = vadd.s32 %v614, 96
        %v627 = vadd.s32 %v614, 104
        %v628 = vadd.s32 %v614, 112
        %v629 = vadd.s32 %v614, 120
        %v630 = vadd.s32 %v614, 128
        %v631 = vadd.s32 %v614, 136
        %v632 = vadd.s32 %v614, 144
        %v633 = vadd.s32 %v614, 152
        %v634 = vadd.s32 %v614, 160
        %v635 = vadd.s32 %v614, 168
        %v636 = vadd.s32 %v614, 176
        %v637 = vadd.s32 %v614, 184
        %v638 = vadd.s32 %v614, 192
        %v639 = vadd.s32 %v614, 200
        %v640 = vadd.s32 %v614, 208
        %v641 = vadd.s32 %v614, 216
        %v642 = vadd.s32 %v614, 224
        %v643 = vadd.s32 %v614, 232
        %v644 = vadd.s32 %v614, 240
        %v645 = vadd.s32 %v614, 248
        %v646 = vstv %s612
        %v647 = vadd.s32 %v646, %v614
        %v648 = vadd.s32 %v646, %v615
        %v649 = vadd.s32 %v646, %v616
        %v650 = vadd.s32 %v646, %v617
        %v651 = vadd.s32 %v646, %v618
        %v652 = vadd.s32 %v646, %v619
        %v653 = vadd.s32 %v646, %v620
        %v654 = vadd.s32 %v646, %v621
        %v655 = vadd.s32 %v646, %v622
        %v656 = vadd.s32 %v646, %v623
        %v657 = vadd.s32 %v646, %v624
        %v658 = vadd.s32 %v646, %v625
        %v659 = vadd.s32 %v646, %v626
        %v660 = vadd.s32 %v646, %v627
        %v661 = vadd.s32 %v646, %v628
        %v662 = vadd.s32 %v646, %v629
        %v663 = vadd.s32 %v646, %v630
        %v664 = vadd.s32 %v646, %v631
        %v665 = vadd.s32 %v646, %v632
        %v666 = vadd.s32 %v646, %v633
        %v667 = vadd.s32 %v646, %v634
        %v668 = vadd.s32 %v646, %v635
        %v669 = vadd.s32 %v646, %v636
        %v670 = vadd.s32 %v646, %v637
        %v671 = vadd.s32 %v646, %v638
        %v672 = vadd.s32 %v646, %v639
        %v673 = vadd.s32 %v646, %v640
        %v674 = vadd.s32 %v646, %v641
        %v675 = vadd.s32 %v646, %v642
        %v676 = vadd.s32 %v646, %v643
        %v677 = vadd.s32 %v646, %v644
        %v678 = vadd.s32 %v646, %v645
        %vm679 = vcmp.lt.s32.totalorder %v647, 512
        %vm680 = vcmp.lt.s32.totalorder %v648, 512
        %vm681 = vcmp.lt.s32.totalorder %v649, 512
        %vm682 = vcmp.lt.s32.totalorder %v650, 512
        %vm683 = vcmp.lt.s32.totalorder %v651, 512
        %vm684 = vcmp.lt.s32.totalorder %v652, 512
        %vm685 = vcmp.lt.s32.totalorder %v653, 512
        %vm686 = vcmp.lt.s32.totalorder %v654, 512
        %vm687 = vcmp.lt.s32.totalorder %v655, 512
        %vm688 = vcmp.lt.s32.totalorder %v656, 512
        %vm689 = vcmp.lt.s32.totalorder %v657, 512
        %vm690 = vcmp.lt.s32.totalorder %v658, 512
        %vm691 = vcmp.lt.s32.totalorder %v659, 512
        %vm692 = vcmp.lt.s32.totalorder %v660, 512
        %vm693 = vcmp.lt.s32.totalorder %v661, 512
        %vm694 = vcmp.lt.s32.totalorder %v662, 512
        %vm695 = vcmp.lt.s32.totalorder %v663, 512
        %vm696 = vcmp.lt.s32.totalorder %v664, 512
        %vm697 = vcmp.lt.s32.totalorder %v665, 512
        %vm698 = vcmp.lt.s32.totalorder %v666, 512
        %vm699 = vcmp.lt.s32.totalorder %v667, 512
        %vm700 = vcmp.lt.s32.totalorder %v668, 512
        %vm701 = vcmp.lt.s32.totalorder %v669, 512
        %vm702 = vcmp.lt.s32.totalorder %v670, 512
        %vm703 = vcmp.lt.s32.totalorder %v671, 512
        %vm704 = vcmp.lt.s32.totalorder %v672, 512
        %vm705 = vcmp.lt.s32.totalorder %v673, 512
        %vm706 = vcmp.lt.s32.totalorder %v674, 512
        %vm707 = vcmp.lt.s32.totalorder %v675, 512
        %vm708 = vcmp.lt.s32.totalorder %v676, 512
        %vm709 = vcmp.lt.s32.totalorder %v677, 512
        %vm710 = vcmp.lt.s32.totalorder %v678, 512
        %v711 = vsel %vm679, 1, 0
        %v712 = vsel %vm680, 1, 0
        %v713 = vsel %vm681, 1, 0
        %v714 = vsel %vm682, 1, 0
        %v715 = vsel %vm683, 1, 0
        %v716 = vsel %vm684, 1, 0
        %v717 = vsel %vm685, 1, 0
        %v718 = vsel %vm686, 1, 0
        %v719 = vsel %vm687, 1, 0
        %v720 = vsel %vm688, 1, 0
        %v721 = vsel %vm689, 1, 0
        %v722 = vsel %vm690, 1, 0
        %v723 = vsel %vm691, 1, 0
        %v724 = vsel %vm692, 1, 0
        %v725 = vsel %vm693, 1, 0
        %v726 = vsel %vm694, 1, 0
        %v727 = vsel %vm695, 1, 0
        %v728 = vsel %vm696, 1, 0
        %v729 = vsel %vm697, 1, 0
        %v730 = vsel %vm698, 1, 0
        %v731 = vsel %vm699, 1, 0
        %v732 = vsel %vm700, 1, 0
        %v733 = vsel %vm701, 1, 0
        %v734 = vsel %vm702, 1, 0
        %v735 = vsel %vm703, 1, 0
        %v736 = vsel %vm704, 1, 0
        %v737 = vsel %vm705, 1, 0
        %v738 = vsel %vm706, 1, 0
        %v739 = vsel %vm707, 1, 0
        %v740 = vsel %vm708, 1, 0
        %v741 = vsel %vm709, 1, 0
        %v742 = vsel %vm710, 1, 0
        %vm743 = vcmp.eq.s32.totalorder %v711, 1
        %vm744 = vcmp.eq.s32.totalorder %v712, 1
        %vm745 = vcmp.eq.s32.totalorder %v713, 1
        %vm746 = vcmp.eq.s32.totalorder %v714, 1
        %vm747 = vcmp.eq.s32.totalorder %v715, 1
        %vm748 = vcmp.eq.s32.totalorder %v716, 1
        %vm749 = vcmp.eq.s32.totalorder %v717, 1
        %vm750 = vcmp.eq.s32.totalorder %v718, 1
        %vm751 = vcmp.eq.s32.totalorder %v719, 1
        %vm752 = vcmp.eq.s32.totalorder %v720, 1
        %vm753 = vcmp.eq.s32.totalorder %v721, 1
        %vm754 = vcmp.eq.s32.totalorder %v722, 1
        %vm755 = vcmp.eq.s32.totalorder %v723, 1
        %vm756 = vcmp.eq.s32.totalorder %v724, 1
        %vm757 = vcmp.eq.s32.totalorder %v725, 1
        %vm758 = vcmp.eq.s32.totalorder %v726, 1
        %vm759 = vcmp.eq.s32.totalorder %v727, 1
        %vm760 = vcmp.eq.s32.totalorder %v728, 1
        %vm761 = vcmp.eq.s32.totalorder %v729, 1
        %vm762 = vcmp.eq.s32.totalorder %v730, 1
        %vm763 = vcmp.eq.s32.totalorder %v731, 1
        %vm764 = vcmp.eq.s32.totalorder %v732, 1
        %vm765 = vcmp.eq.s32.totalorder %v733, 1
        %vm766 = vcmp.eq.s32.totalorder %v734, 1
        %vm767 = vcmp.eq.s32.totalorder %v735, 1
        %vm768 = vcmp.eq.s32.totalorder %v736, 1
        %vm769 = vcmp.eq.s32.totalorder %v737, 1
        %vm770 = vcmp.eq.s32.totalorder %v738, 1
        %vm771 = vcmp.eq.s32.totalorder %v739, 1
        %vm772 = vcmp.eq.s32.totalorder %v740, 1
        %vm773 = vcmp.eq.s32.totalorder %v741, 1
        %vm774 = vcmp.eq.s32.totalorder %v742, 1
        %v775 = vsel %vm743, %v422, 0.0
        %v776 = vsel %vm744, %v427, 0.0
        %v777 = vsel %vm745, %v432, 0.0
        %v778 = vsel %vm746, %v437, 0.0
        %v779 = vsel %vm747, %v442, 0.0
        %v780 = vsel %vm748, %v447, 0.0
        %v781 = vsel %vm749, %v452, 0.0
        %v782 = vsel %vm750, %v457, 0.0
        %v783 = vsel %vm751, %v462, 0.0
        %v784 = vsel %vm752, %v467, 0.0
        %v785 = vsel %vm753, %v472, 0.0
        %v786 = vsel %vm754, %v477, 0.0
        %v787 = vsel %vm755, %v482, 0.0
        %v788 = vsel %vm756, %v487, 0.0
        %v789 = vsel %vm757, %v492, 0.0
        %v790 = vsel %vm758, %v497, 0.0
        %v791 = vsel %vm759, %v502, 0.0
        %v792 = vsel %vm760, %v507, 0.0
        %v793 = vsel %vm761, %v512, 0.0
        %v794 = vsel %vm762, %v517, 0.0
        %v795 = vsel %vm763, %v522, 0.0
        %v796 = vsel %vm764, %v527, 0.0
        %v797 = vsel %vm765, %v532, 0.0
        %v798 = vsel %vm766, %v537, 0.0
        %v799 = vsel %vm767, %v542, 0.0
        %v800 = vsel %vm768, %v547, 0.0
        %v801 = vsel %vm769, %v552, 0.0
        %v802 = vsel %vm770, %v557, 0.0
        %v803 = vsel %vm771, %v562, 0.0
        %v804 = vsel %vm772, %v567, 0.0
        %v805 = vsel %vm773, %v572, 0.0
        %v806 = vsel %vm774, %v577, 0.0
        %v807 = vadd.f32 %v775, %v776
        %v808 = vadd.f32 %v807, %v777
        %v809 = vadd.f32 %v808, %v778
        %v810 = vadd.f32 %v809, %v779
        %v811 = vadd.f32 %v810, %v780
        %v812 = vadd.f32 %v811, %v781
        %v813 = vadd.f32 %v812, %v782
        %v814 = vadd.f32 %v813, %v783
        %v815 = vadd.f32 %v814, %v784
        %v816 = vadd.f32 %v815, %v785
        %v817 = vadd.f32 %v816, %v786
        %v818 = vadd.f32 %v817, %v787
        %v819 = vadd.f32 %v818, %v788
        %v820 = vadd.f32 %v819, %v789
        %v821 = vadd.f32 %v820, %v790
        %v822 = vadd.f32 %v821, %v791
        %v823 = vadd.f32 %v822, %v792
        %v824 = vadd.f32 %v823, %v793
        %v825 = vadd.f32 %v824, %v794
        %v826 = vadd.f32 %v825, %v795
        %v827 = vadd.f32 %v826, %v796
        %v828 = vadd.f32 %v827, %v797
        %v829 = vadd.f32 %v828, %v798
        %v830 = vadd.f32 %v829, %v799
        %v831 = vadd.f32 %v830, %v800
        %v832 = vadd.f32 %v831, %v801
        %v833 = vadd.f32 %v832, %v802
        %v834 = vadd.f32 %v833, %v803
        %v835 = vadd.f32 %v834, %v804
        %v836 = vadd.f32 %v835, %v805
        %v837 = vadd.f32 %v836, %v806
        %v838 = vrot.slane %v837, 4
        %v839 = vadd.f32 %v837, %v838
        %v840 = vrot.slane %v839, 2
        %v841 = vadd.f32 %v839, %v840
        %v842 = vrot.slane %v841, 1
        %v843 = vadd.f32 %v841, %v842
        %v844 = vmul.f32 %v775, %v775
        %v845 = vmul.f32 %v776, %v776
        %v846 = vmul.f32 %v777, %v777
        %v847 = vmul.f32 %v778, %v778
        %v848 = vmul.f32 %v779, %v779
        %v849 = vmul.f32 %v780, %v780
        %v850 = vmul.f32 %v781, %v781
        %v851 = vmul.f32 %v782, %v782
        %v852 = vmul.f32 %v783, %v783
        %v853 = vmul.f32 %v784, %v784
        %v854 = vmul.f32 %v785, %v785
        %v855 = vmul.f32 %v786, %v786
        %v856 = vmul.f32 %v787, %v787
        %v857 = vmul.f32 %v788, %v788
        %v858 = vmul.f32 %v789, %v789
        %v859 = vmul.f32 %v790, %v790
        %v860 = vmul.f32 %v791, %v791
        %v861 = vmul.f32 %v792, %v792
        %v862 = vmul.f32 %v793, %v793
        %v863 = vmul.f32 %v794, %v794
        %v864 = vmul.f32 %v795, %v795
        %v865 = vmul.f32 %v796, %v796
        %v866 = vmul.f32 %v797, %v797
        %v867 = vmul.f32 %v798, %v798
        %v868 = vmul.f32 %v799, %v799
        %v869 = vmul.f32 %v800, %v800
        %v870 = vmul.f32 %v801, %v801
        %v871 = vmul.f32 %v802, %v802
        %v872 = vmul.f32 %v803, %v803
        %v873 = vmul.f32 %v804, %v804
        %v874 = vmul.f32 %v805, %v805
        %v875 = vmul.f32 %v806, %v806
        %v876 = vadd.f32 %v844, %v845
        %v877 = vadd.f32 %v876, %v846
        %v878 = vadd.f32 %v877, %v847
        %v879 = vadd.f32 %v878, %v848
        %v880 = vadd.f32 %v879, %v849
        %v881 = vadd.f32 %v880, %v850
        %v882 = vadd.f32 %v881, %v851
        %v883 = vadd.f32 %v882, %v852
        %v884 = vadd.f32 %v883, %v853
        %v885 = vadd.f32 %v884, %v854
        %v886 = vadd.f32 %v885, %v855
        %v887 = vadd.f32 %v886, %v856
        %v888 = vadd.f32 %v887, %v857
        %v889 = vadd.f32 %v888, %v858
        %v890 = vadd.f32 %v889, %v859
        %v891 = vadd.f32 %v890, %v860
        %v892 = vadd.f32 %v891, %v861
        %v893 = vadd.f32 %v892, %v862
        %v894 = vadd.f32 %v893, %v863
        %v895 = vadd.f32 %v894, %v864
        %v896 = vadd.f32 %v895, %v865
        %v897 = vadd.f32 %v896, %v866
        %v898 = vadd.f32 %v897, %v867
        %v899 = vadd.f32 %v898, %v868
        %v900 = vadd.f32 %v899, %v869
        %v901 = vadd.f32 %v900, %v870
        %v902 = vadd.f32 %v901, %v871
        %v903 = vadd.f32 %v902, %v872
        %v904 = vadd.f32 %v903, %v873
        %v905 = vadd.f32 %v904, %v874
        %v906 = vadd.f32 %v905, %v875
        %v907 = vrot.slane %v906, 4
        %v908 = vadd.f32 %v906, %v907
        %v909 = vrot.slane %v908, 2
        %v910 = vadd.f32 %v908, %v909
        %v911 = vrot.slane %v910, 1
        %v912 = vadd.f32 %v910, %v911
        %vm913 = vcmask 1040384
        %v914 = vsel %vm913, %v843, %v912
        %vm915 = vcmask 1041408
        %v916 = vsel %vm915, %v914, 0.0
        %917 = vst [vmem:[%s202] sm:$0xff] %v916
        %s918 = sand.u32 %s98, 1
        %s919 = scalar_lea.sflag [#allocation3], %s918
        %s920 = sand.u32 %s98, 1
        %s921 = smul.addr %s920, 256
        %s922 = scalar_lea.vmem [#allocation2], %s921
        %s923 = sand.u32 %s124, 1
        %s924 = scalar_lea.sflag [#allocation5], %s923
        %s925 = sand.u32 %s124, 1
        %s926 = smul.addr %s925, 8
        %s927 = scalar_lea.vmem [#allocation4], %s926
        // Predicated region
        $region33: #{tpu_custom_call.1} parent=31 // pred_check
          %p928 = pneg %p108
        $region34: #{tpu_custom_call.1} parent=31 // pred_check_branch
          %930 = sbr.rel (%p928) target = $region36
        $region35: #{tpu_custom_call.1} parent=31 // pred_region
          %s931 = smul.u32 32, %s22
          %s933 = ssub.s32 4096, 4096
          %934 = vsyncadd %s919, %s933
          %s935 = smul.addr %s931, 128
          %s936 = scalar_lea.hbm %s3, %s935
          %s937 = sshll.u32 %s922, 4
          %s938 = int_to_ptr.vmem [resolvable:$true] %s937
          %943 = dma.vmem_to_hbm [thread:$0]  %s938, 4096, %s936, %s919, 128, 128, 8
        $region36: #{tpu_custom_call.1} parent=31 // pred_fallthru
          _
        // Predicated region
        $region37: #{tpu_custom_call.1} parent=31 // pred_check
          %p944 = pneg %p134
        $region38: #{tpu_custom_call.1} parent=31 // pred_check_branch
          %946 = sbr.rel (%p944) target = $region40
        $region39: #{tpu_custom_call.1} parent=31 // pred_region
          %s948 = ssub.s32 128, 128
          %949 = vsyncadd %s924, %s948
          %s950 = smul.addr %s22, 128
          %s951 = scalar_lea.hbm %s4, %s950
          %s953 = sshll.u32 %s927, 4
          %s954 = int_to_ptr.vmem [resolvable:$true] %s953
          %956 = dma.vmem_to_hbm [thread:$0]  %s954, 128, %s951, %s924
        $region40: #{tpu_custom_call.1} parent=31 // pred_fallthru
          _
      $region32: #{tpu_custom_call.1} parent=5 // pred_fallthru
        _
      %p957 = scmp.le.s32.totalorder 2, %s17
      // Predicated region
      $region41: #{tpu_custom_call.1} parent=5 // pred_check
        %p958 = pneg %p957
      $region42: #{tpu_custom_call.1} parent=5 // pred_check_branch
        %960 = sbr.rel (%p958) target = $region44
      $region43: #{tpu_custom_call.1} parent=5 // pred_region
        %s961 = ssub.s32 %s17, 2
        // Predicated region
        $region45: #{tpu_custom_call.1} parent=43 // pred_check
          %p962 = pneg %p114
        $region46: #{tpu_custom_call.1} parent=43 // pred_check_branch
          %964 = sbr.rel (%p962) target = $region48
        $region47: #{tpu_custom_call.1} parent=43 // pred_region
          %s965 = sand.u32 %s99, 1
          %s966 = scalar_lea.sflag [#allocation3], %s965
          %s967 = sand.u32 %s99, 1
          %s968 = smul.addr %s967, 256
          %s969 = scalar_lea.vmem [#allocation2], %s968
          %970 = dma.done %s966, 4096
        $region48: #{tpu_custom_call.1} parent=43 // pred_fallthru
          _
        // Predicated region
        $region49: #{tpu_custom_call.1} parent=43 // pred_check
          %p971 = pneg %p140
        $region50: #{tpu_custom_call.1} parent=43 // pred_check_branch
          %973 = sbr.rel (%p971) target = $region52
        $region51: #{tpu_custom_call.1} parent=43 // pred_region
          %s974 = sand.u32 %s125, 1
          %s975 = scalar_lea.sflag [#allocation5], %s974
          %s976 = sand.u32 %s125, 1
          %s977 = smul.addr %s976, 8
          %s978 = scalar_lea.vmem [#allocation4], %s977
          %979 = dma.done %s975, 128
        $region52: #{tpu_custom_call.1} parent=43 // pred_fallthru
          _
      $region44: #{tpu_custom_call.1} parent=5 // pred_fallthru
        _
    $region6: #{tpu_custom_call.1} parent=1 // loop_footer
      %s21 = sadd.s32 1, %s17
    $region7: #{tpu_custom_call.1} parent=1 // loop_footer_branch
      %16 = sbr.rel target = $region3
    $region8: #{tpu_custom_call.1} parent=1 // loop_exit
      _
    %980 = vsyncpa [#allocation3], 1
    %s981 = scalar_lea.sflag [#allocation3], 1
    %982 = vsyncpa %s981, 1
    %983 = vsyncpa [#allocation5], 1
    %s984 = scalar_lea.sflag [#allocation5], 1
    %985 = vsyncpa %s984, 1

</llo_original>
